<compile_context>
chip_gen: v7x
topology: tpu7x:2x2x1
jax: 0.10.0
libtpu: 0.0.40
codegen_flags: <defaults>
</compile_context>

<pallas_src>
import jax
import jax.numpy as jnp
from jax.experimental import pallas as pl
from jax.experimental.pallas import tpu as pltpu


def _round_up(x, m):
    return ((x + m - 1) // m) * m


def _sublane_tile(itemsize):
    # vreg sublane rows per tile: f32 -> 8, bf16 -> 16, int8/fp8 -> 32
    return {4: 8, 2: 16, 1: 32}.get(itemsize, 8)


def _pick_lane_tile(lanes_total, n_batch, bytes_per_lane, budget_bytes,
                    min_steps=8, max_lanes=32768):
    """Largest lane tile (multiple of 128, dividing lanes_total) such that
    double-buffered in/out blocks + f32 temps fit `budget_bytes` and the grid
    keeps >= min_steps steps (pipeline overlap / megacore sharding)."""
    l_budget = max(128, (budget_bytes // bytes_per_lane) // 128 * 128)
    l_steps = max(128, (n_batch * lanes_total // min_steps) // 128 * 128)
    l = min(l_budget, l_steps, max_lanes)
    while l > 128 and lanes_total % l != 0:
        l -= 128
    return l


def _make_dense_kernel(c):
    """Small-C, sublane-dense kernel.

    x_ref / o_ref : (1, C, SUB, L) VMEM  -- per-channel slabs fully dense
    w_ref         : (C*C,) SMEM  (row-major [co, ci])
    b_ref         : (C,)   SMEM
    """

    def kernel(x_ref, w_ref, b_ref, o_ref):
        for co in range(c):
            # z[co] = b[co] + sum_ci w[co, ci] * x[ci]    (f32 accumulate)
            acc = None
            for ci in range(c):
                t = w_ref[co * c + ci] * x_ref[0, ci].astype(jnp.float32)
                acc = t if acc is None else acc + t
            z = acc + b_ref[co]
            # sigmoid(z) = 0.5 * tanh(0.5 * z) + 0.5  -> single EUP op, exact
            y = 0.5 * jnp.tanh(0.5 * z) + 0.5
            xg = x_ref[0, co]
            if xg.dtype == jnp.bfloat16:
                # keep gating tail in bf16 (v6e/v7x VALU density)
                o_ref[0, co] = (xg * y.astype(jnp.bfloat16)).astype(o_ref.dtype)
            else:
                o_ref[0, co] = (xg.astype(jnp.float32) * y).astype(o_ref.dtype)

    return kernel


def _make_mxu_kernel():
    """Larger-C kernel: channel mix on the MXU over a (C, TS) tile."""

    def kernel(x_ref, w_ref, b_ref, o_ref):
        x = x_ref[0]                                            # (C, TS)
        z = jnp.dot(w_ref[...].astype(jnp.float32),
                    x.astype(jnp.float32),
                    preferred_element_type=jnp.float32)
        z = z + b_ref[...].astype(jnp.float32)                  # (C, 1) bcast
        y = 0.5 * jnp.tanh(0.5 * z) + 0.5
        if x.dtype == jnp.bfloat16:
            o_ref[0] = (x * y.astype(jnp.bfloat16)).astype(o_ref.dtype)
        else:
            o_ref[0] = (x.astype(jnp.float32) * y).astype(o_ref.dtype)

    return kernel


def pa_forward(x_nchw, conv_w, conv_b, *,
               block_budget_bytes=8 * 1024 * 1024,   # blocks+temps, v7x-safe
               vmem_limit_bytes=32 * 1024 * 1024):   # << 64 MiB v7x physical
    """Pixel attention forward: out = x * sigmoid(Conv2d_1x1(x)).

    x_nchw : (N, C, H, W)
    conv_w : (C_out, C_in, 1, 1)  (PyTorch Conv2d weight layout)
    conv_b : (C_out,)
    """
    N, C, H, W = x_nchw.shape
    HW = H * W
    dtype = x_nchw.dtype
    itemsize = jnp.dtype(dtype).itemsize
    sub = _sublane_tile(itemsize)
    w2d = conv_w.reshape(C, C)                       # (C_out, C_in), free view

    compiler_params = pltpu.CompilerParams(
        dimension_semantics=("parallel", "parallel"),
        vmem_limit_bytes=vmem_limit_bytes,
    )

    if C < sub:
        # -------- small-C path: sublane-dense scalar-splat FMAs (VPU) --------
        lanes = _round_up(HW, sub * 128) // sub      # multiple of 128
        # 2 bufs x (in + out) in input dtype + ~3 f32 intermediates per lane
        bytes_per_lane = 4 * C * sub * itemsize + 3 * C * sub * 4
        l = _pick_lane_tile(lanes, N, bytes_per_lane, block_budget_bytes)
        hw_pad = lanes * sub

        x3 = x_nchw.reshape(N, C, HW)
        if hw_pad != HW:
            x3 = jnp.pad(x3, ((0, 0), (0, 0), (0, hw_pad - HW)))
        x4 = x3.reshape(N, C, sub, lanes)            # free reshape of HW axis
        w_flat = w2d.reshape(C * C).astype(jnp.float32)   # 1-D: no SMEM 2-D pad
        b_flat = conv_b.reshape(C).astype(jnp.float32)

        out4 = pl.pallas_call(
            _make_dense_kernel(C),
            out_shape=jax.ShapeDtypeStruct((N, C, sub, lanes), dtype),
            grid_spec=pltpu.PrefetchScalarGridSpec(
                num_scalar_prefetch=0,
                grid=(N, lanes // l),
                in_specs=[
                    pl.BlockSpec((1, C, sub, l), lambda n, s: (n, 0, 0, s)),
                    pl.BlockSpec(memory_space=pltpu.MemorySpace.SMEM),
                    pl.BlockSpec(memory_space=pltpu.MemorySpace.SMEM),
                ],
                out_specs=pl.BlockSpec((1, C, sub, l), lambda n, s: (n, 0, 0, s)),
            ),
            compiler_params=compiler_params,
        )(x4, w_flat, b_flat)

        out3 = out4.reshape(N, C, hw_pad)
        if hw_pad != HW:
            out3 = out3[:, :, :HW]
        return out3.reshape(N, C, H, W)

    # ------------ larger-C path: channel mix on the MXU ----------------------
    c_pad = _round_up(C, sub)                        # account for sublane pad
    lanes = _round_up(HW, 128)
    bytes_per_lane = 4 * c_pad * itemsize + 3 * c_pad * 4
    ts = _pick_lane_tile(lanes, N, bytes_per_lane, block_budget_bytes)
    hw_pad = lanes

    x3 = x_nchw.reshape(N, C, HW)
    if hw_pad != HW:
        x3 = jnp.pad(x3, ((0, 0), (0, 0), (0, hw_pad - HW)))

    out3 = pl.pallas_call(
        _make_mxu_kernel(),
        out_shape=jax.ShapeDtypeStruct((N, C, hw_pad), dtype),
        grid_spec=pltpu.PrefetchScalarGridSpec(
            num_scalar_prefetch=0,
            grid=(N, lanes // ts),
            in_specs=[
                pl.BlockSpec((1, C, ts), lambda n, s: (n, 0, s)),
                pl.BlockSpec((C, C), lambda n, s: (0, 0)),
                pl.BlockSpec((C, 1), lambda n, s: (0, 0)),
            ],
            out_specs=pl.BlockSpec((1, C, ts), lambda n, s: (n, 0, s)),
        ),
        compiler_params=compiler_params,
    )(x3, w2d, conv_b.reshape(C, 1))

    if hw_pad != HW:
        out3 = out3[:, :, :HW]
    return out3.reshape(N, C, H, W)


if __name__ == "__main__":
    # shapes consistent with the module: batch=2, nf=4, spatial=16
    N, C, H, W = 2, 4, 16, 16

    key = jax.random.PRNGKey(0)
    kx, kw, kb = jax.random.split(key, 3)

    x = jax.random.normal(kx, (N, C, H, W), dtype=jnp.float32)
    # deterministic synthetic Conv2d(nf, nf, 1) parameters
    fan_in = C  # 1x1 kernel
    bound = 1.0 / (fan_in ** 0.5)
    conv_w = jax.random.uniform(kw, (C, C, 1, 1), jnp.float32, -bound, bound)
    conv_b = jax.random.uniform(kb, (C,), jnp.float32, -bound, bound)

    out = jax.block_until_ready(pa_forward(x, conv_w, conv_b))

    # pure-JAX reference in native NCHW (1x1 conv == channel matmul)
    y_ref = jax.nn.sigmoid(
        jnp.einsum("nchw,oc->nohw", x, conv_w[:, :, 0, 0],
                   precision=jax.lax.Precision.HIGHEST)
        + conv_b[None, :, None, None]
    )
    ref = x * y_ref

    assert out.shape == (N, C, H, W)
    err = float(jnp.max(jnp.abs(out - ref)))
    assert jnp.allclose(out, ref, atol=1e-5, rtol=1e-5), err

    print("KERNEL_OK")
</pallas_src>

<mosaic_0001>
module attributes {stable_mosaic.version = 11 : i64} {
  func.func @kernel(%arg0: i32, %arg1: i32, %arg2: memref<1x4x8x128xf32, #tpu.memory_space<vmem>>, %arg3: memref<16xf32, #tpu.memory_space<smem>>, %arg4: memref<4xf32, #tpu.memory_space<smem>>, %arg5: memref<1x4x8x128xf32, #tpu.memory_space<vmem>>) attributes {dimension_semantics = [#tpu.dimension_semantics<parallel>, #tpu.dimension_semantics<parallel>], iteration_bounds = array<i64: 2, 1>, scalar_prefetch = 0 : i64, scratch_operands = 0 : i64, tpu.core_type = #tpu.core_type<tc>, window_params = [{transform_indices = @transform_0, window_bounds = array<i64: 1, 4, 8, 128>}, {transform_indices = @transform_1, window_bounds = array<i64: 16>}, {transform_indices = @transform_2, window_bounds = array<i64: 4>}, {transform_indices = @transform_3, window_bounds = array<i64: 1, 4, 8, 128>}]} {
    %c0 = arith.constant 0 : index
    %0 = memref.load %arg3[%c0] : memref<16xf32, #tpu.memory_space<smem>>
    %c0_0 = arith.constant 0 : index
    %c0_1 = arith.constant 0 : index
    %c0_2 = arith.constant 0 : index
    %c0_3 = arith.constant 0 : index
    %1 = vector.load %arg2[%c0_0, %c0_1, %c0_2, %c0_3] : memref<1x4x8x128xf32, #tpu.memory_space<vmem>>, vector<1x1x8x128xf32>
    %2 = vector.shape_cast %1 : vector<1x1x8x128xf32> to vector<8x128xf32>
    %3 = vector.broadcast %0 : f32 to vector<8x128xf32>
    %4 = arith.mulf %3, %2 : vector<8x128xf32>
    %c1 = arith.constant 1 : index
    %5 = memref.load %arg3[%c1] : memref<16xf32, #tpu.memory_space<smem>>
    %c0_4 = arith.constant 0 : index
    %c1_5 = arith.constant 1 : index
    %c0_6 = arith.constant 0 : index
    %c0_7 = arith.constant 0 : index
    %6 = vector.load %arg2[%c0_4, %c1_5, %c0_6, %c0_7] : memref<1x4x8x128xf32, #tpu.memory_space<vmem>>, vector<1x1x8x128xf32>
    %7 = vector.shape_cast %6 : vector<1x1x8x128xf32> to vector<8x128xf32>
    %8 = vector.broadcast %5 : f32 to vector<8x128xf32>
    %9 = arith.mulf %8, %7 : vector<8x128xf32>
    %10 = arith.addf %4, %9 : vector<8x128xf32>
    %c2 = arith.constant 2 : index
    %11 = memref.load %arg3[%c2] : memref<16xf32, #tpu.memory_space<smem>>
    %c0_8 = arith.constant 0 : index
    %c2_9 = arith.constant 2 : index
    %c0_10 = arith.constant 0 : index
    %c0_11 = arith.constant 0 : index
    %12 = vector.load %arg2[%c0_8, %c2_9, %c0_10, %c0_11] : memref<1x4x8x128xf32, #tpu.memory_space<vmem>>, vector<1x1x8x128xf32>
    %13 = vector.shape_cast %12 : vector<1x1x8x128xf32> to vector<8x128xf32>
    %14 = vector.broadcast %11 : f32 to vector<8x128xf32>
    %15 = arith.mulf %14, %13 : vector<8x128xf32>
    %16 = arith.addf %10, %15 : vector<8x128xf32>
    %c3 = arith.constant 3 : index
    %17 = memref.load %arg3[%c3] : memref<16xf32, #tpu.memory_space<smem>>
    %c0_12 = arith.constant 0 : index
    %c3_13 = arith.constant 3 : index
    %c0_14 = arith.constant 0 : index
    %c0_15 = arith.constant 0 : index
    %18 = vector.load %arg2[%c0_12, %c3_13, %c0_14, %c0_15] : memref<1x4x8x128xf32, #tpu.memory_space<vmem>>, vector<1x1x8x128xf32>
    %19 = vector.shape_cast %18 : vector<1x1x8x128xf32> to vector<8x128xf32>
    %20 = vector.broadcast %17 : f32 to vector<8x128xf32>
    %21 = arith.mulf %20, %19 : vector<8x128xf32>
    %22 = arith.addf %16, %21 : vector<8x128xf32>
    %c0_16 = arith.constant 0 : index
    %23 = memref.load %arg4[%c0_16] : memref<4xf32, #tpu.memory_space<smem>>
    %24 = vector.broadcast %23 : f32 to vector<8x128xf32>
    %25 = arith.addf %22, %24 : vector<8x128xf32>
    %cst = arith.constant 5.000000e-01 : f32
    %26 = vector.broadcast %cst : f32 to vector<8x128xf32>
    %27 = arith.mulf %26, %25 : vector<8x128xf32>
    %28 = math.tanh %27 : vector<8x128xf32>
    %cst_17 = arith.constant 5.000000e-01 : f32
    %29 = vector.broadcast %cst_17 : f32 to vector<8x128xf32>
    %30 = arith.mulf %29, %28 : vector<8x128xf32>
    %cst_18 = arith.constant 5.000000e-01 : f32
    %31 = vector.broadcast %cst_18 : f32 to vector<8x128xf32>
    %32 = arith.addf %30, %31 : vector<8x128xf32>
    %c0_19 = arith.constant 0 : index
    %c0_20 = arith.constant 0 : index
    %c0_21 = arith.constant 0 : index
    %c0_22 = arith.constant 0 : index
    %33 = vector.load %arg2[%c0_19, %c0_20, %c0_21, %c0_22] : memref<1x4x8x128xf32, #tpu.memory_space<vmem>>, vector<1x1x8x128xf32>
    %34 = vector.shape_cast %33 : vector<1x1x8x128xf32> to vector<8x128xf32>
    %35 = arith.mulf %34, %32 : vector<8x128xf32>
    %c0_23 = arith.constant 0 : index
    %c0_24 = arith.constant 0 : index
    %c0_25 = arith.constant 0 : index
    %c0_26 = arith.constant 0 : index
    %36 = vector.load %arg5[%c0_23, %c0_24, %c0_25, %c0_26] : memref<1x4x8x128xf32, #tpu.memory_space<vmem>>, vector<1x1x8x128xf32>
    %37 = vector.shape_cast %36 : vector<1x1x8x128xf32> to vector<8x128xf32>
    %38 = vector.shape_cast %35 : vector<8x128xf32> to vector<1x1x8x128xf32>
    tpu.vector_store %arg5[%c0_23, %c0_24, %c0_25, %c0_26], %38 {strides = array<i32>} : memref<1x4x8x128xf32, #tpu.memory_space<vmem>>, vector<1x1x8x128xf32>,
    %c4 = arith.constant 4 : index
    %39 = memref.load %arg3[%c4] : memref<16xf32, #tpu.memory_space<smem>>
    %c0_27 = arith.constant 0 : index
    %c0_28 = arith.constant 0 : index
    %c0_29 = arith.constant 0 : index
    %c0_30 = arith.constant 0 : index
    %40 = vector.load %arg2[%c0_27, %c0_28, %c0_29, %c0_30] : memref<1x4x8x128xf32, #tpu.memory_space<vmem>>, vector<1x1x8x128xf32>
    %41 = vector.shape_cast %40 : vector<1x1x8x128xf32> to vector<8x128xf32>
    %42 = vector.broadcast %39 : f32 to vector<8x128xf32>
    %43 = arith.mulf %42, %41 : vector<8x128xf32>
    %c5 = arith.constant 5 : index
    %44 = memref.load %arg3[%c5] : memref<16xf32, #tpu.memory_space<smem>>
    %c0_31 = arith.constant 0 : index
    %c1_32 = arith.constant 1 : index
    %c0_33 = arith.constant 0 : index
    %c0_34 = arith.constant 0 : index
    %45 = vector.load %arg2[%c0_31, %c1_32, %c0_33, %c0_34] : memref<1x4x8x128xf32, #tpu.memory_space<vmem>>, vector<1x1x8x128xf32>
    %46 = vector.shape_cast %45 : vector<1x1x8x128xf32> to vector<8x128xf32>
    %47 = vector.broadcast %44 : f32 to vector<8x128xf32>
    %48 = arith.mulf %47, %46 : vector<8x128xf32>
    %49 = arith.addf %43, %48 : vector<8x128xf32>
    %c6 = arith.constant 6 : index
    %50 = memref.load %arg3[%c6] : memref<16xf32, #tpu.memory_space<smem>>
    %c0_35 = arith.constant 0 : index
    %c2_36 = arith.constant 2 : index
    %c0_37 = arith.constant 0 : index
    %c0_38 = arith.constant 0 : index
    %51 = vector.load %arg2[%c0_35, %c2_36, %c0_37, %c0_38] : memref<1x4x8x128xf32, #tpu.memory_space<vmem>>, vector<1x1x8x128xf32>
    %52 = vector.shape_cast %51 : vector<1x1x8x128xf32> to vector<8x128xf32>
    %53 = vector.broadcast %50 : f32 to vector<8x128xf32>
    %54 = arith.mulf %53, %52 : vector<8x128xf32>
    %55 = arith.addf %49, %54 : vector<8x128xf32>
    %c7 = arith.constant 7 : index
    %56 = memref.load %arg3[%c7] : memref<16xf32, #tpu.memory_space<smem>>
    %c0_39 = arith.constant 0 : index
    %c3_40 = arith.constant 3 : index
    %c0_41 = arith.constant 0 : index
    %c0_42 = arith.constant 0 : index
    %57 = vector.load %arg2[%c0_39, %c3_40, %c0_41, %c0_42] : memref<1x4x8x128xf32, #tpu.memory_space<vmem>>, vector<1x1x8x128xf32>
    %58 = vector.shape_cast %57 : vector<1x1x8x128xf32> to vector<8x128xf32>
    %59 = vector.broadcast %56 : f32 to vector<8x128xf32>
    %60 = arith.mulf %59, %58 : vector<8x128xf32>
    %61 = arith.addf %55, %60 : vector<8x128xf32>
    %c1_43 = arith.constant 1 : index
    %62 = memref.load %arg4[%c1_43] : memref<4xf32, #tpu.memory_space<smem>>
    %63 = vector.broadcast %62 : f32 to vector<8x128xf32>
    %64 = arith.addf %61, %63 : vector<8x128xf32>
    %cst_44 = arith.constant 5.000000e-01 : f32
    %65 = vector.broadcast %cst_44 : f32 to vector<8x128xf32>
    %66 = arith.mulf %65, %64 : vector<8x128xf32>
    %67 = math.tanh %66 : vector<8x128xf32>
    %cst_45 = arith.constant 5.000000e-01 : f32
    %68 = vector.broadcast %cst_45 : f32 to vector<8x128xf32>
    %69 = arith.mulf %68, %67 : vector<8x128xf32>
    %cst_46 = arith.constant 5.000000e-01 : f32
    %70 = vector.broadcast %cst_46 : f32 to vector<8x128xf32>
    %71 = arith.addf %69, %70 : vector<8x128xf32>
    %c0_47 = arith.constant 0 : index
    %c1_48 = arith.constant 1 : index
    %c0_49 = arith.constant 0 : index
    %c0_50 = arith.constant 0 : index
    %72 = vector.load %arg2[%c0_47, %c1_48, %c0_49, %c0_50] : memref<1x4x8x128xf32, #tpu.memory_space<vmem>>, vector<1x1x8x128xf32>
    %73 = vector.shape_cast %72 : vector<1x1x8x128xf32> to vector<8x128xf32>
    %74 = arith.mulf %73, %71 : vector<8x128xf32>
    %c0_51 = arith.constant 0 : index
    %c1_52 = arith.constant 1 : index
    %c0_53 = arith.constant 0 : index
    %c0_54 = arith.constant 0 : index
    %75 = vector.load %arg5[%c0_51, %c1_52, %c0_53, %c0_54] : memref<1x4x8x128xf32, #tpu.memory_space<vmem>>, vector<1x1x8x128xf32>
    %76 = vector.shape_cast %75 : vector<1x1x8x128xf32> to vector<8x128xf32>
    %77 = vector.shape_cast %74 : vector<8x128xf32> to vector<1x1x8x128xf32>
    tpu.vector_store %arg5[%c0_51, %c1_52, %c0_53, %c0_54], %77 {strides = array<i32>} : memref<1x4x8x128xf32, #tpu.memory_space<vmem>>, vector<1x1x8x128xf32>,
    %c8 = arith.constant 8 : index
    %78 = memref.load %arg3[%c8] : memref<16xf32, #tpu.memory_space<smem>>
    %c0_55 = arith.constant 0 : index
    %c0_56 = arith.constant 0 : index
    %c0_57 = arith.constant 0 : index
    %c0_58 = arith.constant 0 : index
    %79 = vector.load %arg2[%c0_55, %c0_56, %c0_57, %c0_58] : memref<1x4x8x128xf32, #tpu.memory_space<vmem>>, vector<1x1x8x128xf32>
    %80 = vector.shape_cast %79 : vector<1x1x8x128xf32> to vector<8x128xf32>
    %81 = vector.broadcast %78 : f32 to vector<8x128xf32>
    %82 = arith.mulf %81, %80 : vector<8x128xf32>
    %c9 = arith.constant 9 : index
    %83 = memref.load %arg3[%c9] : memref<16xf32, #tpu.memory_space<smem>>
    %c0_59 = arith.constant 0 : index
    %c1_60 = arith.constant 1 : index
    %c0_61 = arith.constant 0 : index
    %c0_62 = arith.constant 0 : index
    %84 = vector.load %arg2[%c0_59, %c1_60, %c0_61, %c0_62] : memref<1x4x8x128xf32, #tpu.memory_space<vmem>>, vector<1x1x8x128xf32>
    %85 = vector.shape_cast %84 : vector<1x1x8x128xf32> to vector<8x128xf32>
    %86 = vector.broadcast %83 : f32 to vector<8x128xf32>
    %87 = arith.mulf %86, %85 : vector<8x128xf32>
    %88 = arith.addf %82, %87 : vector<8x128xf32>
    %c10 = arith.constant 10 : index
    %89 = memref.load %arg3[%c10] : memref<16xf32, #tpu.memory_space<smem>>
    %c0_63 = arith.constant 0 : index
    %c2_64 = arith.constant 2 : index
    %c0_65 = arith.constant 0 : index
    %c0_66 = arith.constant 0 : index
    %90 = vector.load %arg2[%c0_63, %c2_64, %c0_65, %c0_66] : memref<1x4x8x128xf32, #tpu.memory_space<vmem>>, vector<1x1x8x128xf32>
    %91 = vector.shape_cast %90 : vector<1x1x8x128xf32> to vector<8x128xf32>
    %92 = vector.broadcast %89 : f32 to vector<8x128xf32>
    %93 = arith.mulf %92, %91 : vector<8x128xf32>
    %94 = arith.addf %88, %93 : vector<8x128xf32>
    %c11 = arith.constant 11 : index
    %95 = memref.load %arg3[%c11] : memref<16xf32, #tpu.memory_space<smem>>
    %c0_67 = arith.constant 0 : index
    %c3_68 = arith.constant 3 : index
    %c0_69 = arith.constant 0 : index
    %c0_70 = arith.constant 0 : index
    %96 = vector.load %arg2[%c0_67, %c3_68, %c0_69, %c0_70] : memref<1x4x8x128xf32, #tpu.memory_space<vmem>>, vector<1x1x8x128xf32>
    %97 = vector.shape_cast %96 : vector<1x1x8x128xf32> to vector<8x128xf32>
    %98 = vector.broadcast %95 : f32 to vector<8x128xf32>
    %99 = arith.mulf %98, %97 : vector<8x128xf32>
    %100 = arith.addf %94, %99 : vector<8x128xf32>
    %c2_71 = arith.constant 2 : index
    %101 = memref.load %arg4[%c2_71] : memref<4xf32, #tpu.memory_space<smem>>
    %102 = vector.broadcast %101 : f32 to vector<8x128xf32>
    %103 = arith.addf %100, %102 : vector<8x128xf32>
    %cst_72 = arith.constant 5.000000e-01 : f32
    %104 = vector.broadcast %cst_72 : f32 to vector<8x128xf32>
    %105 = arith.mulf %104, %103 : vector<8x128xf32>
    %106 = math.tanh %105 : vector<8x128xf32>
    %cst_73 = arith.constant 5.000000e-01 : f32
    %107 = vector.broadcast %cst_73 : f32 to vector<8x128xf32>
    %108 = arith.mulf %107, %106 : vector<8x128xf32>
    %cst_74 = arith.constant 5.000000e-01 : f32
    %109 = vector.broadcast %cst_74 : f32 to vector<8x128xf32>
    %110 = arith.addf %108, %109 : vector<8x128xf32>
    %c0_75 = arith.constant 0 : index
    %c2_76 = arith.constant 2 : index
    %c0_77 = arith.constant 0 : index
    %c0_78 = arith.constant 0 : index
    %111 = vector.load %arg2[%c0_75, %c2_76, %c0_77, %c0_78] : memref<1x4x8x128xf32, #tpu.memory_space<vmem>>, vector<1x1x8x128xf32>
    %112 = vector.shape_cast %111 : vector<1x1x8x128xf32> to vector<8x128xf32>
    %113 = arith.mulf %112, %110 : vector<8x128xf32>
    %c0_79 = arith.constant 0 : index
    %c2_80 = arith.constant 2 : index
    %c0_81 = arith.constant 0 : index
    %c0_82 = arith.constant 0 : index
    %114 = vector.load %arg5[%c0_79, %c2_80, %c0_81, %c0_82] : memref<1x4x8x128xf32, #tpu.memory_space<vmem>>, vector<1x1x8x128xf32>
    %115 = vector.shape_cast %114 : vector<1x1x8x128xf32> to vector<8x128xf32>
    %116 = vector.shape_cast %113 : vector<8x128xf32> to vector<1x1x8x128xf32>
    tpu.vector_store %arg5[%c0_79, %c2_80, %c0_81, %c0_82], %116 {strides = array<i32>} : memref<1x4x8x128xf32, #tpu.memory_space<vmem>>, vector<1x1x8x128xf32>,
    %c12 = arith.constant 12 : index
    %117 = memref.load %arg3[%c12] : memref<16xf32, #tpu.memory_space<smem>>
    %c0_83 = arith.constant 0 : index
    %c0_84 = arith.constant 0 : index
    %c0_85 = arith.constant 0 : index
    %c0_86 = arith.constant 0 : index
    %118 = vector.load %arg2[%c0_83, %c0_84, %c0_85, %c0_86] : memref<1x4x8x128xf32, #tpu.memory_space<vmem>>, vector<1x1x8x128xf32>
    %119 = vector.shape_cast %118 : vector<1x1x8x128xf32> to vector<8x128xf32>
    %120 = vector.broadcast %117 : f32 to vector<8x128xf32>
    %121 = arith.mulf %120, %119 : vector<8x128xf32>
    %c13 = arith.constant 13 : index
    %122 = memref.load %arg3[%c13] : memref<16xf32, #tpu.memory_space<smem>>
    %c0_87 = arith.constant 0 : index
    %c1_88 = arith.constant 1 : index
    %c0_89 = arith.constant 0 : index
    %c0_90 = arith.constant 0 : index
    %123 = vector.load %arg2[%c0_87, %c1_88, %c0_89, %c0_90] : memref<1x4x8x128xf32, #tpu.memory_space<vmem>>, vector<1x1x8x128xf32>
    %124 = vector.shape_cast %123 : vector<1x1x8x128xf32> to vector<8x128xf32>
    %125 = vector.broadcast %122 : f32 to vector<8x128xf32>
    %126 = arith.mulf %125, %124 : vector<8x128xf32>
    %127 = arith.addf %121, %126 : vector<8x128xf32>
    %c14 = arith.constant 14 : index
    %128 = memref.load %arg3[%c14] : memref<16xf32, #tpu.memory_space<smem>>
    %c0_91 = arith.constant 0 : index
    %c2_92 = arith.constant 2 : index
    %c0_93 = arith.constant 0 : index
    %c0_94 = arith.constant 0 : index
    %129 = vector.load %arg2[%c0_91, %c2_92, %c0_93, %c0_94] : memref<1x4x8x128xf32, #tpu.memory_space<vmem>>, vector<1x1x8x128xf32>
    %130 = vector.shape_cast %129 : vector<1x1x8x128xf32> to vector<8x128xf32>
    %131 = vector.broadcast %128 : f32 to vector<8x128xf32>
    %132 = arith.mulf %131, %130 : vector<8x128xf32>
    %133 = arith.addf %127, %132 : vector<8x128xf32>
    %c15 = arith.constant 15 : index
    %134 = memref.load %arg3[%c15] : memref<16xf32, #tpu.memory_space<smem>>
    %c0_95 = arith.constant 0 : index
    %c3_96 = arith.constant 3 : index
    %c0_97 = arith.constant 0 : index
    %c0_98 = arith.constant 0 : index
    %135 = vector.load %arg2[%c0_95, %c3_96, %c0_97, %c0_98] : memref<1x4x8x128xf32, #tpu.memory_space<vmem>>, vector<1x1x8x128xf32>
    %136 = vector.shape_cast %135 : vector<1x1x8x128xf32> to vector<8x128xf32>
    %137 = vector.broadcast %134 : f32 to vector<8x128xf32>
    %138 = arith.mulf %137, %136 : vector<8x128xf32>
    %139 = arith.addf %133, %138 : vector<8x128xf32>
    %c3_99 = arith.constant 3 : index
    %140 = memref.load %arg4[%c3_99] : memref<4xf32, #tpu.memory_space<smem>>
    %141 = vector.broadcast %140 : f32 to vector<8x128xf32>
    %142 = arith.addf %139, %141 : vector<8x128xf32>
    %cst_100 = arith.constant 5.000000e-01 : f32
    %143 = vector.broadcast %cst_100 : f32 to vector<8x128xf32>
    %144 = arith.mulf %143, %142 : vector<8x128xf32>
    %145 = math.tanh %144 : vector<8x128xf32>
    %cst_101 = arith.constant 5.000000e-01 : f32
    %146 = vector.broadcast %cst_101 : f32 to vector<8x128xf32>
    %147 = arith.mulf %146, %145 : vector<8x128xf32>
    %cst_102 = arith.constant 5.000000e-01 : f32
    %148 = vector.broadcast %cst_102 : f32 to vector<8x128xf32>
    %149 = arith.addf %147, %148 : vector<8x128xf32>
    %c0_103 = arith.constant 0 : index
    %c3_104 = arith.constant 3 : index
    %c0_105 = arith.constant 0 : index
    %c0_106 = arith.constant 0 : index
    %150 = vector.load %arg2[%c0_103, %c3_104, %c0_105, %c0_106] : memref<1x4x8x128xf32, #tpu.memory_space<vmem>>, vector<1x1x8x128xf32>
    %151 = vector.shape_cast %150 : vector<1x1x8x128xf32> to vector<8x128xf32>
    %152 = arith.mulf %151, %149 : vector<8x128xf32>
    %c0_107 = arith.constant 0 : index
    %c3_108 = arith.constant 3 : index
    %c0_109 = arith.constant 0 : index
    %c0_110 = arith.constant 0 : index
    %153 = vector.load %arg5[%c0_107, %c3_108, %c0_109, %c0_110] : memref<1x4x8x128xf32, #tpu.memory_space<vmem>>, vector<1x1x8x128xf32>
    %154 = vector.shape_cast %153 : vector<1x1x8x128xf32> to vector<8x128xf32>
    %155 = vector.shape_cast %152 : vector<8x128xf32> to vector<1x1x8x128xf32>
    tpu.vector_store %arg5[%c0_107, %c3_108, %c0_109, %c0_110], %155 {strides = array<i32>} : memref<1x4x8x128xf32, #tpu.memory_space<vmem>>, vector<1x1x8x128xf32>,
    return
  }
  func.func @transform_0(%arg0: i32, %arg1: i32) -> (i32, i32, i32, i32) {
    %c0_i32 = arith.constant 0 : i32
    %c0_i32_0 = arith.constant 0 : i32
    %c0_i32_1 = arith.constant 0 : i32
    return %arg0, %c0_i32, %c0_i32_0, %arg1 : i32, i32, i32, i32
  }
  func.func @transform_1(%arg0: i32, %arg1: i32) -> i32 {
    %c0_i32 = arith.constant 0 : i32
    %c0_i32_0 = arith.constant 0 : i32
    return %c0_i32 : i32
  }
  func.func @transform_2(%arg0: i32, %arg1: i32) -> i32 {
    %c0_i32 = arith.constant 0 : i32
    %c0_i32_0 = arith.constant 0 : i32
    return %c0_i32 : i32
  }
  func.func @transform_3(%arg0: i32, %arg1: i32) -> (i32, i32, i32, i32) {
    %c0_i32 = arith.constant 0 : i32
    %c0_i32_0 = arith.constant 0 : i32
    %c0_i32_1 = arith.constant 0 : i32
    return %arg0, %c0_i32, %c0_i32_0, %arg1 : i32, i32, i32, i32
  }
}

</mosaic_0001>

<llo_original>
// kernel: tpu_custom_call.1
$region0: #{tpu_custom_call.1}
  #allocation0 [shape = 'u32[]', space=smem, size = 0x4, offset = 0x4, fixed_abs, tag = 'smem constant byte address 0x4 - core index']
  #allocation1 [shape = 'u32[144,128]{1,0:T(1,128)}', space=vmem, size = 0x12000, scoped, tag = 'internal scratch']
  %s0 = inlined_call_operand.hbm [shape: f32[2,4,8,128], index: 0, kind: input, shape index: {}]
  %s1 = inlined_call_operand.vmem [shape: f32[16], index: 1, kind: input, shape index: {}]
  %s2 = inlined_call_operand.vmem [shape: f32[4], index: 2, kind: input, shape index: {}]
  %s3 = inlined_call_operand.hbm [shape: f32[2,4,8,128], index: 3, kind: output, shape index: {}]
  %s4 = sld [smem:[#allocation0]]
  $region57: #{tpu_custom_call.1} parent=0
    _
  %s6 = ssub.s32 1, %s4
  %s7 = scalar_select 0, %s6, %s4
  $region1: #{tpu_custom_call.1} parent=0
    #allocation2 [shape = 'u8[32768]{0}', space=vmem, size = 0x8000, scoped, tag = 'input window, operand 0']
    #allocation3 [shape = 's32[2]{0}', space=sflag, size = 0x8, scoped, tag = 'scoped memory for tpu_custom_call.1']
    #allocation4 [shape = 's32[2]{0}', space=sflag, size = 0x8, scoped, tag = 'scoped memory for tpu_custom_call.1']
    #allocation5 [shape = 's32[2]{0}', space=sflag, size = 0x8, scoped, tag = 'scoped memory for tpu_custom_call.1']
    #allocation6 [shape = 'u8[512]{0}', space=smem, size = 0x200, scoped, tag = 'input window, operand 1, single buffered']
    #allocation7 [shape = 'u8[512]{0}', space=smem, size = 0x200, scoped, tag = 'input window, operand 2, single buffered']
    #allocation8 [shape = 's32[1]{0}', space=sflag, size = 0x4, scoped, tag = 'scoped memory for tpu_custom_call.1']
    #allocation9 [shape = 'u8[32768]{0}', space=vmem, size = 0x8000, scoped, tag = 'output window, operand 0']
    %8 = vsyncpa [#allocation3], 0
    %s9 = scalar_lea.sflag [#allocation3], 1
    %10 = vsyncpa %s9, 0
    %11 = vsyncpa [#allocation5], 0
    %12 = vsyncpa [#allocation8], 0
    %13 = vsyncpa [#allocation4], 0
    %s14 = scalar_lea.sflag [#allocation4], 1
    %15 = vsyncpa %s14, 0
    loop: start=0, step=1, limit=4
    $region2: #{tpu_custom_call.1} parent=1 // loop_pre_header
      _
    $region3: #{tpu_custom_call.1} parent=1 // loop_header
      %s17 = sphi 0, %s21
      %p18 = scmp.ge.s32.totalorder %s17, 4
      %s24 = sphi 0, %s36
      %s25 = sphi 0, %s32
      %s26 = sphi 0, %s24
      %s27 = sphi 0, %s25
      %s28 = sphi 0, %s26
      %s29 = sphi 0, %s27
      %s41 = sphi 0, %s43
      %s44 = sphi 0, %s41
      %s45 = sphi 0, %s44
      %s61 = sphi 0, %s45
      %s65 = sphi 0, %s65
      %s67 = sphi 0, %s65
      %s68 = sphi 0, %s67
      %s82 = sphi 0, %s68
      %s86 = sphi 0, %s86
      %s88 = sphi 0, %s86
      %s89 = sphi 0, %s88
      %s103 = sphi 0, %s89
      %s111 = sphi 0, %s113
      %s114 = sphi 0, %s111
      %s115 = sphi 0, %s114
      %s131 = sphi 0, %s115
    $region4: #{tpu_custom_call.1} parent=1 // loop_header_branch
      %20 = sbr.rel (%p18) target = $region8
    $region5: #{tpu_custom_call.1} parent=1 // loop_body
      %s22 = ssub.s32 %s17, 1
      %s23 = ssub.s32 %s17, 2
      %s30 = sadd.s32 1, %s25
      %p31 = scmp.ge.s32.totalorder %s30, 1
      %s32 = scalar_select %p31, 0, %s30
      %s33 = sadd.s32 1, %s24
      %s34 = scalar_select %p31, %s33, %s24
      %p35 = scmp.ge.s32.totalorder %s34, 2
      %s36 = scalar_select %p35, 0, %s34
      %s37 = ssub.s32 %s24, %s36
      %s38 = ssub.s32 %s25, %s32
      %s39 = sor.u32 %s37, %s38
      %p40 = scmp.eq.s32.totalorder %s39, 0
      %s42 = sadd.s32 %s41, 1
      %s43 = scalar_select %p40, %s41, %s42
      %p46 = pneg %p40
      %p47 = scmp.eq.s32.totalorder %s17, 1
      %p48 = por %p46, %p47
      %p49 = scmp.ne.s32.totalorder %s41, %s44
      %p50 = scmp.eq.s32.totalorder %s17, 0
      %p51 = por %p49, %p50
      %p52 = scmp.ne.s32.totalorder %s41, %s44
      %p53 = scmp.eq.s32.totalorder %s22, 1
      %p54 = por %p52, %p53
      %p55 = scmp.ne.s32.totalorder %s44, %s45
      %p56 = scmp.eq.s32.totalorder %s22, 0
      %p57 = por %p55, %p56
      %p58 = scmp.ne.s32.totalorder %s44, %s45
      %p59 = scmp.eq.s32.totalorder %s23, 1
      %p60 = por %p58, %p59
      %p62 = scmp.ne.s32.totalorder %s45, %s61
      %p63 = scmp.eq.s32.totalorder %s23, 0
      %p64 = por %p62, %p63
      %s66 = sadd.s32 %s65, 1
      %p69 = scmp.eq.s32.totalorder %s17, 1
      %p70 = scmp.ne.s32.totalorder %s65, %s67
      %p71 = scmp.eq.s32.totalorder %s17, 0
      %p72 = por %p70, %p71
      %p73 = scmp.ne.s32.totalorder %s65, %s67
      %p74 = scmp.eq.s32.totalorder %s22, 1
      %p75 = por %p73, %p74
      %p76 = scmp.ne.s32.totalorder %s67, %s68
      %p77 = scmp.eq.s32.totalorder %s22, 0
      %p78 = por %p76, %p77
      %p79 = scmp.ne.s32.totalorder %s67, %s68
      %p80 = scmp.eq.s32.totalorder %s23, 1
      %p81 = por %p79, %p80
      %p83 = scmp.ne.s32.totalorder %s68, %s82
      %p84 = scmp.eq.s32.totalorder %s23, 0
      %p85 = por %p83, %p84
      %s87 = sadd.s32 %s86, 1
      %p90 = scmp.eq.s32.totalorder %s17, 1
      %p91 = scmp.ne.s32.totalorder %s86, %s88
      %p92 = scmp.eq.s32.totalorder %s17, 0
      %p93 = por %p91, %p92
      %p94 = scmp.ne.s32.totalorder %s86, %s88
      %p95 = scmp.eq.s32.totalorder %s22, 1
      %p96 = por %p94, %p95
      %p97 = scmp.ne.s32.totalorder %s88, %s89
      %p98 = scmp.eq.s32.totalorder %s22, 0
      %p99 = por %p97, %p98
      %p100 = scmp.ne.s32.totalorder %s88, %s89
      %p101 = scmp.eq.s32.totalorder %s23, 1
      %p102 = por %p100, %p101
      %p104 = scmp.ne.s32.totalorder %s89, %s103
      %p105 = scmp.eq.s32.totalorder %s23, 0
      %p106 = por %p104, %p105
      %s107 = ssub.s32 %s24, %s36
      %s108 = ssub.s32 %s25, %s32
      %s109 = sor.u32 %s107, %s108
      %p110 = scmp.eq.s32.totalorder %s109, 0
      %s112 = sadd.s32 %s111, 1
      %s113 = scalar_select %p110, %s111, %s112
      %p116 = pneg %p110
      %p117 = scmp.eq.s32.totalorder %s17, 1
      %p118 = por %p116, %p117
      %p119 = scmp.ne.s32.totalorder %s111, %s114
      %p120 = scmp.eq.s32.totalorder %s17, 0
      %p121 = por %p119, %p120
      %p122 = scmp.ne.s32.totalorder %s111, %s114
      %p123 = scmp.eq.s32.totalorder %s22, 1
      %p124 = por %p122, %p123
      %p125 = scmp.ne.s32.totalorder %s114, %s115
      %p126 = scmp.eq.s32.totalorder %s22, 0
      %p127 = por %p125, %p126
      %p128 = scmp.ne.s32.totalorder %s114, %s115
      %p129 = scmp.eq.s32.totalorder %s23, 1
      %p130 = por %p128, %p129
      %p132 = scmp.ne.s32.totalorder %s115, %s131
      %p133 = scmp.eq.s32.totalorder %s23, 0
      %p134 = por %p132, %p133
      %p135 = scmp.le.s32.totalorder 1, %s17
      %p136 = scmp.lt.s32.totalorder %s17, 3
      %p137 = pnand %p135, %p136
      %p138 = pneg %p137
      // Predicated region
      $region9: #{tpu_custom_call.1} parent=5 // pred_check
        _
      $region10: #{tpu_custom_call.1} parent=5 // pred_check_branch
        %140 = sbr.rel (%p137) target = $region12
      $region11: #{tpu_custom_call.1} parent=5 // pred_region
        %s141 = ssub.s32 %s17, 1
        // Predicated region
        $region13: #{tpu_custom_call.1} parent=11 // pred_check
          %p142 = pneg %p78
        $region14: #{tpu_custom_call.1} parent=11 // pred_check_branch
          %144 = sbr.rel (%p142) target = $region16
        $region15: #{tpu_custom_call.1} parent=11 // pred_region
          %s146 = ssub.s32 16, 16
          %147 = vsyncadd [#allocation5], %s146
          %s149 = sshll.u32 %s1, 4
          %s150 = int_to_ptr.vmem [resolvable:$true] %s149
          %152 = dma.vmem_to_smem %s150, 16, [#allocation6], [#allocation5]
        $region16: #{tpu_custom_call.1} parent=11 // pred_fallthru
          _
        // Predicated region
        $region17: #{tpu_custom_call.1} parent=11 // pred_check
          %p153 = pneg %p99
        $region18: #{tpu_custom_call.1} parent=11 // pred_check_branch
          %155 = sbr.rel (%p153) target = $region20
        $region19: #{tpu_custom_call.1} parent=11 // pred_region
          %s157 = ssub.s32 16, 16
          %158 = vsyncadd [#allocation8], %s157
          %s160 = sshll.u32 %s2, 4
          %s161 = int_to_ptr.vmem [resolvable:$true] %s160
          %163 = dma.vmem_to_smem %s161, 16, [#allocation7], [#allocation8]
        $region20: #{tpu_custom_call.1} parent=11 // pred_fallthru
          _
      $region12: #{tpu_custom_call.1} parent=5 // pred_fallthru
        _
      %p164 = scmp.lt.s32.totalorder %s17, 2
      // Predicated region
      $region21: #{tpu_custom_call.1} parent=5 // pred_check
        %p165 = pneg %p164
      $region22: #{tpu_custom_call.1} parent=5 // pred_check_branch
        %167 = sbr.rel (%p165) target = $region24
      $region23: #{tpu_custom_call.1} parent=5 // pred_region
        // Predicated region
        $region25: #{tpu_custom_call.1} parent=23 // pred_check
          %p168 = pneg %p51
        $region26: #{tpu_custom_call.1} parent=23 // pred_check_branch
          %170 = sbr.rel (%p168) target = $region28
        $region27: #{tpu_custom_call.1} parent=23 // pred_region
          %s171 = sand.u32 %s41, 1
          %s172 = scalar_lea.sflag [#allocation3], %s171
          %s173 = sand.u32 %s41, 1
          %s174 = smul.addr %s173, 32
          %s175 = scalar_lea.vmem [#allocation2], %s174
          %s177 = ssub.s32 512, 512
          %178 = vsyncadd %s172, %s177
          %s179 = smul.addr %s24, 4
          %s180 = sadd.s32 %s25, %s179
          %s181 = smul.addr %s180, 128
          %s182 = scalar_lea.hbm %s0, %s181
          %s183 = sshll.u32 %s175, 4
          %s184 = int_to_ptr.vmem [resolvable:$true] %s183
          %189 = dma.hbm_to_vmem [thread:$0]  %s182, 512, %s184, %s172, 128, 128, 8
        $region28: #{tpu_custom_call.1} parent=23 // pred_fallthru
          _
      $region24: #{tpu_custom_call.1} parent=5 // pred_fallthru
        _
      %p190 = scmp.le.s32.totalorder 1, %s17
      %p191 = scmp.lt.s32.totalorder %s17, 3
      %p192 = pnand %p190, %p191
      %p193 = pneg %p192
      // Predicated region
      $region29: #{tpu_custom_call.1} parent=5 // pred_check
        _
      $region30: #{tpu_custom_call.1} parent=5 // pred_check_branch
        %195 = sbr.rel (%p192) target = $region32
      $region31: #{tpu_custom_call.1} parent=5 // pred_region
        %s196 = ssub.s32 %s17, 1
        %s197 = sand.u32 %s44, 1
        %s198 = scalar_lea.sflag [#allocation3], %s197
        %s199 = sand.u32 %s44, 1
        %s200 = smul.addr %s199, 32
        %s201 = scalar_lea.vmem [#allocation2], %s200
        // Predicated region
        $region33: #{tpu_custom_call.1} parent=31 // pred_check
          %p202 = pneg %p57
        $region34: #{tpu_custom_call.1} parent=31 // pred_check_branch
          %204 = sbr.rel (%p202) target = $region36
        $region35: #{tpu_custom_call.1} parent=31 // pred_region
          %205 = dma.done %s198, 512
        $region36: #{tpu_custom_call.1} parent=31 // pred_fallthru
          _
        // Predicated region
        $region37: #{tpu_custom_call.1} parent=31 // pred_check
          %p206 = pneg %p78
        $region38: #{tpu_custom_call.1} parent=31 // pred_check_branch
          %208 = sbr.rel (%p206) target = $region40
        $region39: #{tpu_custom_call.1} parent=31 // pred_region
          %209 = dma.done [#allocation5], 16
        $region40: #{tpu_custom_call.1} parent=31 // pred_fallthru
          _
        // Predicated region
        $region41: #{tpu_custom_call.1} parent=31 // pred_check
          %p210 = pneg %p99
        $region42: #{tpu_custom_call.1} parent=31 // pred_check_branch
          %212 = sbr.rel (%p210) target = $region44
        $region43: #{tpu_custom_call.1} parent=31 // pred_region
          %213 = dma.done [#allocation8], 16
        $region44: #{tpu_custom_call.1} parent=31 // pred_fallthru
          _
        %214 = sfence
        %s215 = sand.u32 %s44, 1
        %s216 = scalar_lea.sflag [#allocation3], %s215
        %s217 = sand.u32 %s44, 1
        %s218 = smul.addr %s217, 32
        %s219 = scalar_lea.vmem [#allocation2], %s218
        %p220 = pneg %p57
        %p221 = pneg %p54
        %p222 = pneg %p78
        %p223 = pneg %p75
        %p224 = pneg %p99
        %p225 = pneg %p96
        %p226 = pneg %p127
        %p227 = pneg %p124
        %s228 = sand.u32 %s114, 1
        %s229 = scalar_lea.sflag [#allocation4], %s228
        %s230 = sand.u32 %s114, 1
        %s231 = smul.addr %s230, 32
        %s232 = scalar_lea.vmem [#allocation9], %s231
        %s233 = sld [smem:[#allocation6]]
        %v234 = vld [vmem:[%s201] sm:$0xff]
        %v235 = vstv %s233
        %v236 = vmul.f32 %v235, %v234
        %s237 = sld [smem:[#allocation6 + $0x1]]
        %s238 = scalar_lea.vmem %s201, 8 [#allocation2]
        %v239 = vld [vmem:[%s238] sm:$0xff]
        %v240 = vstv %s237
        %v241 = vmul.f32 %v240, %v239
        %v242 = vadd.f32 %v236, %v241
        %s243 = sld [smem:[#allocation6 + $0x2]]
        %s244 = scalar_lea.vmem %s201, 16 [#allocation2]
        %v245 = vld [vmem:[%s244] sm:$0xff]
        %v246 = vstv %s243
        %v247 = vmul.f32 %v246, %v245
        %v248 = vadd.f32 %v242, %v247
        %s249 = sld [smem:[#allocation6 + $0x3]]
        %s250 = scalar_lea.vmem %s201, 24 [#allocation2]
        %v251 = vld [vmem:[%s250] sm:$0xff]
        %v252 = vstv %s249
        %v253 = vmul.f32 %v252, %v251
        %v254 = vadd.f32 %v248, %v253
        %s255 = sld [smem:[#allocation7]]
        %v256 = vstv %s255
        %v257 = vadd.f32 %v254, %v256
        %v258 = vmul.f32 %v257, 0.5
        %v259 = vtanh.pop %v258
        %v260 = vmul.f32 %v259, 0.5
        %v261 = vadd.f32 %v260, 0.5
        %v262 = vmul.f32 %v234, %v261
        %263 = vst [vmem:[%s232] sm:$0xff] %v262
        %s264 = sld [smem:[#allocation6 + $0x4]]
        %v265 = vld [vmem:[%s201] sm:$0xff]
        %v266 = vstv %s264
        %v267 = vmul.f32 %v266, %v265
        %s268 = sld [smem:[#allocation6 + $0x5]]
        %v269 = vld [vmem:[%s238] sm:$0xff]
        %v270 = vstv %s268
        %v271 = vmul.f32 %v270, %v269
        %v272 = vadd.f32 %v267, %v271
        %s273 = sld [smem:[#allocation6 + $0x6]]
        %v274 = vld [vmem:[%s244] sm:$0xff]
        %v275 = vstv %s273
        %v276 = vmul.f32 %v275, %v274
        %v277 = vadd.f32 %v272, %v276
        %s278 = sld [smem:[#allocation6 + $0x7]]
        %v279 = vld [vmem:[%s250] sm:$0xff]
        %v280 = vstv %s278
        %v281 = vmul.f32 %v280, %v279
        %v282 = vadd.f32 %v277, %v281
        %s283 = sld [smem:[#allocation7 + $0x1]]
        %v284 = vstv %s283
        %v285 = vadd.f32 %v282, %v284
        %v286 = vmul.f32 %v285, 0.5
        %v287 = vtanh.pop %v286
        %v288 = vmul.f32 %v287, 0.5
        %v289 = vadd.f32 %v288, 0.5
        %v290 = vmul.f32 %v269, %v289
        %s291 = scalar_lea.vmem %s232, 8 [#allocation9]
        %292 = vst [vmem:[%s291] sm:$0xff] %v290
        %s293 = sld [smem:[#allocation6 + $0x8]]
        %v294 = vld [vmem:[%s201] sm:$0xff]
        %v295 = vstv %s293
        %v296 = vmul.f32 %v295, %v294
        %s297 = sld [smem:[#allocation6 + $0x9]]
        %v298 = vld [vmem:[%s238] sm:$0xff]
        %v299 = vstv %s297
        %v300 = vmul.f32 %v299, %v298
        %v301 = vadd.f32 %v296, %v300
        %s302 = sld [smem:[#allocation6 + $0xa]]
        %v303 = vld [vmem:[%s244] sm:$0xff]
        %v304 = vstv %s302
        %v305 = vmul.f32 %v304, %v303
        %v306 = vadd.f32 %v301, %v305
        %s307 = sld [smem:[#allocation6 + $0xb]]
        %v308 = vld [vmem:[%s250] sm:$0xff]
        %v309 = vstv %s307
        %v310 = vmul.f32 %v309, %v308
        %v311 = vadd.f32 %v306, %v310
        %s312 = sld [smem:[#allocation7 + $0x2]]
        %v313 = vstv %s312
        %v314 = vadd.f32 %v311, %v313
        %v315 = vmul.f32 %v314, 0.5
        %v316 = vtanh.pop %v315
        %v317 = vmul.f32 %v316, 0.5
        %v318 = vadd.f32 %v317, 0.5
        %v319 = vmul.f32 %v303, %v318
        %s320 = scalar_lea.vmem %s232, 16 [#allocation9]
        %321 = vst [vmem:[%s320] sm:$0xff] %v319
        %s322 = sld [smem:[#allocation6 + $0xc]]
        %v323 = vld [vmem:[%s201] sm:$0xff]
        %v324 = vstv %s322
        %v325 = vmul.f32 %v324, %v323
        %s326 = sld [smem:[#allocation6 + $0xd]]
        %v327 = vld [vmem:[%s238] sm:$0xff]
        %v328 = vstv %s326
        %v329 = vmul.f32 %v328, %v327
        %v330 = vadd.f32 %v325, %v329
        %s331 = sld [smem:[#allocation6 + $0xe]]
        %v332 = vld [vmem:[%s244] sm:$0xff]
        %v333 = vstv %s331
        %v334 = vmul.f32 %v333, %v332
        %v335 = vadd.f32 %v330, %v334
        %s336 = sld [smem:[#allocation6 + $0xf]]
        %v337 = vld [vmem:[%s250] sm:$0xff]
        %v338 = vstv %s336
        %v339 = vmul.f32 %v338, %v337
        %v340 = vadd.f32 %v335, %v339
        %s341 = sld [smem:[#allocation7 + $0x3]]
        %v342 = vstv %s341
        %v343 = vadd.f32 %v340, %v342
        %v344 = vmul.f32 %v343, 0.5
        %v345 = vtanh.pop %v344
        %v346 = vmul.f32 %v345, 0.5
        %v347 = vadd.f32 %v346, 0.5
        %v348 = vmul.f32 %v337, %v347
        %s349 = scalar_lea.vmem %s232, 24 [#allocation9]
        %350 = vst [vmem:[%s349] sm:$0xff] %v348
        %s351 = sand.u32 %s114, 1
        %s352 = scalar_lea.sflag [#allocation4], %s351
        %s353 = sand.u32 %s114, 1
        %s354 = smul.addr %s353, 32
        %s355 = scalar_lea.vmem [#allocation9], %s354
        // Predicated region
        $region45: #{tpu_custom_call.1} parent=31 // pred_check
          %p356 = pneg %p124
        $region46: #{tpu_custom_call.1} parent=31 // pred_check_branch
          %358 = sbr.rel (%p356) target = $region48
        $region47: #{tpu_custom_call.1} parent=31 // pred_region
          %s360 = ssub.s32 512, 512
          %361 = vsyncadd %s352, %s360
          %s362 = smul.addr %s26, 4
          %s363 = sadd.s32 %s27, %s362
          %s364 = smul.addr %s363, 128
          %s365 = scalar_lea.hbm %s3, %s364
          %s366 = sshll.u32 %s355, 4
          %s367 = int_to_ptr.vmem [resolvable:$true] %s366
          %372 = dma.vmem_to_hbm [thread:$0]  %s367, 512, %s365, %s352, 128, 128, 8
        $region48: #{tpu_custom_call.1} parent=31 // pred_fallthru
          _
      $region32: #{tpu_custom_call.1} parent=5 // pred_fallthru
        _
      %p373 = scmp.le.s32.totalorder 2, %s17
      // Predicated region
      $region49: #{tpu_custom_call.1} parent=5 // pred_check
        %p374 = pneg %p373
      $region50: #{tpu_custom_call.1} parent=5 // pred_check_branch
        %376 = sbr.rel (%p374) target = $region52
      $region51: #{tpu_custom_call.1} parent=5 // pred_region
        %s377 = ssub.s32 %s17, 2
        // Predicated region
        $region53: #{tpu_custom_call.1} parent=51 // pred_check
          %p378 = pneg %p130
        $region54: #{tpu_custom_call.1} parent=51 // pred_check_branch
          %380 = sbr.rel (%p378) target = $region56
        $region55: #{tpu_custom_call.1} parent=51 // pred_region
          %s381 = sand.u32 %s115, 1
          %s382 = scalar_lea.sflag [#allocation4], %s381
          %s383 = sand.u32 %s115, 1
          %s384 = smul.addr %s383, 32
          %s385 = scalar_lea.vmem [#allocation9], %s384
          %386 = dma.done %s382, 512
        $region56: #{tpu_custom_call.1} parent=51 // pred_fallthru
          _
      $region52: #{tpu_custom_call.1} parent=5 // pred_fallthru
        _
    $region6: #{tpu_custom_call.1} parent=1 // loop_footer
      %s21 = sadd.s32 1, %s17
    $region7: #{tpu_custom_call.1} parent=1 // loop_footer_branch
      %16 = sbr.rel target = $region3
    $region8: #{tpu_custom_call.1} parent=1 // loop_exit
      _
    %387 = vsyncpa [#allocation3], 1
    %s388 = scalar_lea.sflag [#allocation3], 1
    %389 = vsyncpa %s388, 1
    %390 = vsyncpa [#allocation4], 1
    %s391 = scalar_lea.sflag [#allocation4], 1
    %392 = vsyncpa %s391, 1
    %393 = vsyncpa [#allocation5], 1
    %s394 = scalar_lea.sflag [#allocation5], 1
    %395 = vsyncpa %s394, 1
    %396 = vsyncpa [#allocation8], 1

</llo_original>
